<compile_context>
chip_gen: v7x
topology: tpu7x:2x2x1
jax: 0.10.0
libtpu: 0.0.40
codegen_flags: <defaults>
</compile_context>

<pallas_src>
import functools

import jax
import jax.numpy as jnp
import numpy as np
from jax.experimental import pallas as pl
from jax.experimental.pallas import tpu as pltpu

HOP = 512  # h_hop_size == h_num_mels == 512


def _dct_ortho_matrix(n: int) -> np.ndarray:
    """Orthonormal DCT-II matrix D with D[k, m] = s_k * sqrt(2/n) * cos(pi*(m+0.5)*k/n).

    Forward DCT:  X = x @ D.T ;  inverse DCT (DCT-III): x = X @ D.
    Deterministic, no learned parameters (matches the fixed DCT/IDCT of the module).
    """
    k = np.arange(n)[:, None].astype(np.float64)
    m = np.arange(n)[None, :].astype(np.float64)
    d = np.cos(np.pi * (m + 0.5) * k / n) * np.sqrt(2.0 / n)
    d[0, :] *= 1.0 / np.sqrt(2.0)
    return d.astype(np.float32)


def _round_up(x: int, m: int) -> int:
    return pl.cdiv(x, m) * m


def _idct_kernel(x_ref, w_ref, o_ref, *, l_norm: bool):
    x = x_ref[...]
    if l_norm:
        # Inverse of the log-compression used in extract(); kept in f32 for the EUP.
        xf = x.astype(jnp.float32)
        xf = jnp.where(xf < 0, -jnp.exp(-xf + 0.6) + 2.0, jnp.exp(xf + 0.6) - 2.0)
        x = xf.astype(w_ref.dtype)
    else:
        x = x.astype(w_ref.dtype)
    # Single MXU matmul per tile, f32 accumulation, direct store (no scratch).
    o_ref[...] = jnp.dot(
        x, w_ref[...], preferred_element_type=jnp.float32
    ).astype(o_ref.dtype)


def _idct_matmul(x, w, *, l_norm: bool, out_dtype, tm_target: int = 512):
    """x: [M, 512] frames (M = B*T), w: [512, 512] DCT basis.  Returns [M, 512]."""
    M, K = x.shape
    K2, N = w.shape
    assert K == HOP and K2 == HOP and N == HOP

    # Pad the frame axis so sublane/lane tiling constraints hold and the grid divides
    # evenly; padded rows are sliced off afterwards (negligible cost).
    sub = 16 if x.dtype == jnp.bfloat16 else 8
    if M <= tm_target:
        tm = max(sub, _round_up(M, sub))
    else:
        tm = tm_target
    m_pad = _round_up(M, tm)
    if m_pad != M:
        x = jnp.pad(x, ((0, m_pad - M), (0, 0)))

    grid = (m_pad // tm,)

    x_bytes = tm * HOP * x.dtype.itemsize
    w_bytes = HOP * HOP * w.dtype.itemsize
    o_bytes = tm * HOP * jnp.dtype(out_dtype).itemsize
    # Double-buffered x/out tiles + resident D + headroom; sized to fit v7x's 64 MiB
    # physical VMEM (32 MiB default scoped) as well as v5e/v6e.
    vmem_limit = min(max(2 * (x_bytes + o_bytes + w_bytes) + (4 << 20), 16 << 20), 48 << 20)

    cost = pl.CostEstimate(
        flops=2 * m_pad * HOP * HOP,
        transcendentals=m_pad * HOP if l_norm else 0,
        bytes_accessed=m_pad * HOP * x.dtype.itemsize
        + HOP * HOP * w.dtype.itemsize
        + m_pad * HOP * jnp.dtype(out_dtype).itemsize,
    )

    kernel = functools.partial(_idct_kernel, l_norm=l_norm)
    out = pl.pallas_call(
        kernel,
        out_shape=jax.ShapeDtypeStruct((m_pad, N), out_dtype),
        grid_spec=pltpu.PrefetchScalarGridSpec(
            num_scalar_prefetch=0,
            grid=grid,
            in_specs=[
                pl.BlockSpec((tm, HOP), lambda i: (i, 0)),    # frames: tiled along M
                pl.BlockSpec((HOP, HOP), lambda i: (0, 0)),   # D: resident, DMA'd once
            ],
            out_specs=pl.BlockSpec((tm, HOP), lambda i: (i, 0)),
        ),
        compiler_params=pltpu.CompilerParams(
            dimension_semantics=("parallel",),  # v7x: shard M across both TensorCores
            vmem_limit_bytes=vmem_limit,
        ),
        cost_estimate=cost,
    )(x, w)
    return out[:M] if m_pad != M else out


class DCT512Pallas:
    """JAX/Pallas port of the DCT-512 vocoder forward (IDCT path)."""

    def __init__(self, l_norm: bool = False, compute_dtype=jnp.float32):
        self.h_sampling_rate = 44100
        self.h_num_mels = 512
        self.h_hop_size = 512
        self.l_norm = l_norm
        self.compute_dtype = jnp.dtype(compute_dtype)
        # Fixed orthonormal DCT basis; bf16 basis (with f32 MXU accumulation) gives full
        # MXU rate and halves HBM/VMEM traffic on v5e/v6e/v7x.
        self._D = jnp.asarray(_dct_ortho_matrix(HOP)).astype(self.compute_dtype)

    def forward(self, mel, f0):
        # f0 is accepted but unused, exactly as in the PyTorch forward.
        assert mel.shape[-1] == 512
        B, T, _ = mel.shape
        out_dtype = mel.dtype
        frames = mel.reshape(B * T, HOP)
        if not self.l_norm:
            # No elementwise transform -> stream the frames at compute precision.
            frames = frames.astype(self.compute_dtype)
        audio_frames = _idct_matmul(
            frames, self._D, l_norm=self.l_norm, out_dtype=out_dtype
        )
        audio = audio_frames.reshape(B, T * HOP)
        return audio[:, None, :]  # unsqueeze(1) -> [B, 1, T*512]

    __call__ = forward


def _reference_forward(mel, D, l_norm=False):
    x = mel
    if l_norm:
        x = jnp.where(x < 0, -jnp.exp(-x + 0.6) + 2.0, jnp.exp(x + 0.6) - 2.0)
    audio = jnp.einsum("btk,kn->btn", x, D).reshape(mel.shape[0], -1)
    return audio[:, None, :]


if __name__ == "__main__":
    key = jax.random.PRNGKey(0)
    k_mel, k_f0, k_mel2 = jax.random.split(key, 3)

    # Small demo shapes consistent with the module (last dim must be 512).
    B, T = 2, 8
    mel = jax.random.normal(k_mel, (B, T, 512), dtype=jnp.float32)
    f0 = jax.random.uniform(k_f0, (B, T), dtype=jnp.float32) * 400.0  # unused

    D_f32 = jnp.asarray(_dct_ortho_matrix(HOP))

    # 1) f32 path, no l_norm: single grid step, D resident, no reduction axis.
    model = DCT512Pallas(l_norm=False, compute_dtype=jnp.float32)
    audio = jax.block_until_ready(model(mel, f0))
    assert audio.shape == (B, 1, T * 512), audio.shape
    ref = _reference_forward(mel, D_f32, l_norm=False)
    np.testing.assert_allclose(np.asarray(audio), np.asarray(ref), rtol=1e-5, atol=1e-5)

    # 2) l_norm path (in-kernel exp/where in f32).
    model_ln = DCT512Pallas(l_norm=True, compute_dtype=jnp.float32)
    audio_ln = jax.block_until_ready(model_ln(mel, f0))
    ref_ln = _reference_forward(mel, D_f32, l_norm=True)
    np.testing.assert_allclose(np.asarray(audio_ln), np.asarray(ref_ln), rtol=1e-4, atol=1e-2)

    # 3) bf16 compute (full MXU rate), f32 accumulation -> looser tolerance vs f32 ref.
    model_bf16 = DCT512Pallas(l_norm=False, compute_dtype=jnp.bfloat16)
    audio_bf16 = jax.block_until_ready(model_bf16(mel, f0))
    np.testing.assert_allclose(np.asarray(audio_bf16), np.asarray(ref), rtol=5e-2, atol=5e-2)

    # 4) Larger frame count exercising the tiled-M path (M=600 -> padded to 1024, 2 tiles).
    B2, T2 = 2, 300
    mel2 = jax.random.normal(k_mel2, (B2, T2, 512), dtype=jnp.float32)
    f02 = jnp.zeros((B2, T2), dtype=jnp.float32)
    audio2 = jax.block_until_ready(model(mel2, f02))
    assert audio2.shape == (B2, 1, T2 * 512), audio2.shape
    ref2 = _reference_forward(mel2, D_f32, l_norm=False)
    np.testing.assert_allclose(np.asarray(audio2), np.asarray(ref2), rtol=1e-5, atol=1e-5)

    print("KERNEL_OK")
</pallas_src>

<mosaic_0001>
module attributes {stable_mosaic.version = 11 : i64} {
  func.func @_idct_kernel(%arg0: i32, %arg1: memref<16x512xf32, #tpu.memory_space<vmem>>, %arg2: memref<512x512xf32, #tpu.memory_space<vmem>>, %arg3: memref<16x512xf32, #tpu.memory_space<vmem>>) attributes {dimension_semantics = [#tpu.dimension_semantics<parallel>], iteration_bounds = array<i64: 1>, scalar_prefetch = 0 : i64, scratch_operands = 0 : i64, tpu.core_type = #tpu.core_type<tc>, window_params = [{transform_indices = @transform_0, window_bounds = array<i64: 16, 512>}, {pipeline_mode = #tpu.pipeline_mode<synchronous>, transform_indices = @transform_1, window_bounds = array<i64: 512, 512>}, {transform_indices = @transform_2, window_bounds = array<i64: 16, 512>}]} {
    %c0 = arith.constant 0 : index
    %c0_0 = arith.constant 0 : index
    %0 = vector.load %arg1[%c0, %c0_0] : memref<16x512xf32, #tpu.memory_space<vmem>>, vector<16x512xf32>
    %c0_1 = arith.constant 0 : index
    %c0_2 = arith.constant 0 : index
    %1 = vector.load %arg2[%c0_1, %c0_2] : memref<512x512xf32, #tpu.memory_space<vmem>>, vector<512x512xf32>
    %cst = arith.constant dense<0.000000e+00> : vector<16x512xf32>
    %2 = tpu.matmul %0, %1, %cst {dimension_numbers = #tpu.dot_dimension_numbers<[1], [0], [0], [1], [0, 0, 1, 1], [], []>} : vector<16x512xf32>, vector<512x512xf32>, vector<16x512xf32> -> vector<16x512xf32>
    %c0_3 = arith.constant 0 : index
    %c0_4 = arith.constant 0 : index
    %3 = vector.load %arg3[%c0_3, %c0_4] : memref<16x512xf32, #tpu.memory_space<vmem>>, vector<16x512xf32>
    tpu.vector_store %arg3[%c0_3, %c0_4], %2 {strides = array<i32>} : memref<16x512xf32, #tpu.memory_space<vmem>>, vector<16x512xf32>,
    return
  }
  func.func @transform_0(%arg0: i32) -> (i32, i32) {
    %c0_i32 = arith.constant 0 : i32
    %c0_i32_0 = arith.constant 0 : i32
    return %arg0, %c0_i32 : i32, i32
  }
  func.func @transform_1(%arg0: i32) -> (i32, i32) {
    %c0_i32 = arith.constant 0 : i32
    %c0_i32_0 = arith.constant 0 : i32
    %c0_i32_1 = arith.constant 0 : i32
    return %c0_i32, %c0_i32_0 : i32, i32
  }
  func.func @transform_2(%arg0: i32) -> (i32, i32) {
    %c0_i32 = arith.constant 0 : i32
    %c0_i32_0 = arith.constant 0 : i32
    return %arg0, %c0_i32 : i32, i32
  }
}

</mosaic_0001>

<llo_original>
// kernel: tpu_custom_call.1
$region0: #{tpu_custom_call.1}
  #allocation0 [shape = 'u32[]', space=smem, size = 0x4, offset = 0x4, fixed_abs, tag = 'smem constant byte address 0x4 - core index']
  #allocation1 [shape = 'u32[144,128]{1,0:T(1,128)}', space=vmem, size = 0x12000, scoped, tag = 'internal scratch']
  %s0 = inlined_call_operand.hbm [shape: f32[16,512], index: 0, kind: input, shape index: {}]
  %s1 = inlined_call_operand.hbm [shape: f32[512,512], index: 1, kind: input, shape index: {}]
  %s2 = inlined_call_operand.hbm [shape: f32[16,512], index: 2, kind: output, shape index: {}]
  %s3 = sld [smem:[#allocation0]]
  $region26: #{tpu_custom_call.1} parent=0
    _
  %s5 = ssub.s32 1, %s3
  %s6 = scalar_select 0, %s5, %s3
  $region1: #{tpu_custom_call.1} parent=0
    #allocation2 [shape = 'u8[32768]{0}', space=vmem, size = 0x8000, scoped, tag = 'input window, operand 0, single buffered']
    #allocation3 [shape = 's32[1]{0}', space=sflag, size = 0x4, scoped, tag = 'scoped memory for tpu_custom_call.1']
    #allocation4 [shape = 's32[1]{0}', space=sflag, size = 0x4, scoped, tag = 'scoped memory for tpu_custom_call.1']
    #allocation5 [shape = 'u8[1048576]{0}', space=vmem, size = 0x100000, scoped, tag = 'input window, operand 1, single buffered']
    #allocation6 [shape = 's32[1]{0}', space=sflag, size = 0x4, scoped, tag = 'scoped memory for tpu_custom_call.1']
    #allocation7 [shape = 'u8[32768]{0}', space=vmem, size = 0x8000, scoped, tag = 'output window, operand 0, single buffered']
    %7 = vsyncpa [#allocation3], 0
    %8 = vsyncpa [#allocation6], 0
    %9 = vsyncpa [#allocation4], 0
    // Predicated region
    $region2: #{tpu_custom_call.1} parent=1 // pred_check
      _
    $region3: #{tpu_custom_call.1} parent=1 // pred_check_branch
      %11 = sbr.rel (0) target = $region5
    $region4: #{tpu_custom_call.1} parent=1 // pred_region
      %s13 = ssub.s32 1024, 1024
      %14 = vsyncadd [#allocation3], %s13
      %s15 = sshll.u32 [#allocation2], 4
      %s16 = int_to_ptr.vmem [resolvable:$true] %s15
      %21 = dma.hbm_to_vmem [thread:$0]  %s0, 1024, %s16, [#allocation3], 512, 512, 32
    $region5: #{tpu_custom_call.1} parent=1 // pred_fallthru
      _
    // Predicated region
    $region6: #{tpu_custom_call.1} parent=1 // pred_check
      _
    $region7: #{tpu_custom_call.1} parent=1 // pred_check_branch
      %23 = sbr.rel (0) target = $region9
    $region8: #{tpu_custom_call.1} parent=1 // pred_region
      %s25 = ssub.s32 32768, 32768
      %26 = vsyncadd [#allocation6], %s25
      %s27 = sshll.u32 [#allocation5], 4
      %s28 = int_to_ptr.vmem [resolvable:$true] %s27
      %33 = dma.hbm_to_vmem [thread:$0]  %s1, 32768, %s28, [#allocation6], 512, 512, 32
    $region9: #{tpu_custom_call.1} parent=1 // pred_fallthru
      _
    // Predicated region
    $region10: #{tpu_custom_call.1} parent=1 // pred_check
      _
    $region11: #{tpu_custom_call.1} parent=1 // pred_check_branch
      %35 = sbr.rel (0) target = $region13
    $region12: #{tpu_custom_call.1} parent=1 // pred_region
      %36 = dma.done [#allocation3], 1024
    $region13: #{tpu_custom_call.1} parent=1 // pred_fallthru
      _
    // Predicated region
    $region14: #{tpu_custom_call.1} parent=1 // pred_check
      _
    $region15: #{tpu_custom_call.1} parent=1 // pred_check_branch
      %38 = sbr.rel (0) target = $region17
    $region16: #{tpu_custom_call.1} parent=1 // pred_region
      %39 = dma.done [#allocation6], 32768
    $region17: #{tpu_custom_call.1} parent=1 // pred_fallthru
      _
    %v40 = vld [vmem:[#allocation2] sm:$0xff]
    %v41 = vld [vmem:[#allocation2 + $0x8] sm:$0xff]
    %v42 = vld [vmem:[#allocation2 + $0x10] sm:$0xff]
    %v43 = vld [vmem:[#allocation2 + $0x18] sm:$0xff]
    %v44 = vld [vmem:[#allocation2 + $0x20] sm:$0xff]
    %v45 = vld [vmem:[#allocation2 + $0x28] sm:$0xff]
    %v46 = vld [vmem:[#allocation2 + $0x30] sm:$0xff]
    %v47 = vld [vmem:[#allocation2 + $0x38] sm:$0xff]
    %v48 = vld [vmem:[#allocation5] sm:$0xff]
    %v49 = vld [vmem:[#allocation5 + $0x8] sm:$0xff]
    %v50 = vld [vmem:[#allocation5 + $0x10] sm:$0xff]
    %v51 = vld [vmem:[#allocation5 + $0x18] sm:$0xff]
    %v52 = vld [vmem:[#allocation5 + $0x20] sm:$0xff]
    %v53 = vld [vmem:[#allocation5 + $0x28] sm:$0xff]
    %v54 = vld [vmem:[#allocation5 + $0x30] sm:$0xff]
    %v55 = vld [vmem:[#allocation5 + $0x38] sm:$0xff]
    %v56 = vld [vmem:[#allocation5 + $0x40] sm:$0xff]
    %v57 = vld [vmem:[#allocation5 + $0x48] sm:$0xff]
    %v58 = vld [vmem:[#allocation5 + $0x50] sm:$0xff]
    %v59 = vld [vmem:[#allocation5 + $0x58] sm:$0xff]
    %v60 = vld [vmem:[#allocation5 + $0x60] sm:$0xff]
    %v61 = vld [vmem:[#allocation5 + $0x68] sm:$0xff]
    %v62 = vld [vmem:[#allocation5 + $0x70] sm:$0xff]
    %v63 = vld [vmem:[#allocation5 + $0x78] sm:$0xff]
    %v64 = vld [vmem:[#allocation5 + $0x80] sm:$0xff]
    %v65 = vld [vmem:[#allocation5 + $0x88] sm:$0xff]
    %v66 = vld [vmem:[#allocation5 + $0x90] sm:$0xff]
    %v67 = vld [vmem:[#allocation5 + $0x98] sm:$0xff]
    %v68 = vld [vmem:[#allocation5 + $0xa0] sm:$0xff]
    %v69 = vld [vmem:[#allocation5 + $0xa8] sm:$0xff]
    %v70 = vld [vmem:[#allocation5 + $0xb0] sm:$0xff]
    %v71 = vld [vmem:[#allocation5 + $0xb8] sm:$0xff]
    %v72 = vld [vmem:[#allocation5 + $0xc0] sm:$0xff]
    %v73 = vld [vmem:[#allocation5 + $0xc8] sm:$0xff]
    %v74 = vld [vmem:[#allocation5 + $0xd0] sm:$0xff]
    %v75 = vld [vmem:[#allocation5 + $0xd8] sm:$0xff]
    %v76 = vld [vmem:[#allocation5 + $0xe0] sm:$0xff]
    %v77 = vld [vmem:[#allocation5 + $0xe8] sm:$0xff]
    %v78 = vld [vmem:[#allocation5 + $0xf0] sm:$0xff]
    %v79 = vld [vmem:[#allocation5 + $0xf8] sm:$0xff]
    %v80 = vld [vmem:[#allocation5 + $0x100] sm:$0xff]
    %v81 = vld [vmem:[#allocation5 + $0x108] sm:$0xff]
    %v82 = vld [vmem:[#allocation5 + $0x110] sm:$0xff]
    %v83 = vld [vmem:[#allocation5 + $0x118] sm:$0xff]
    %v84 = vld [vmem:[#allocation5 + $0x120] sm:$0xff]
    %v85 = vld [vmem:[#allocation5 + $0x128] sm:$0xff]
    %v86 = vld [vmem:[#allocation5 + $0x130] sm:$0xff]
    %v87 = vld [vmem:[#allocation5 + $0x138] sm:$0xff]
    %v88 = vld [vmem:[#allocation5 + $0x140] sm:$0xff]
    %v89 = vld [vmem:[#allocation5 + $0x148] sm:$0xff]
    %v90 = vld [vmem:[#allocation5 + $0x150] sm:$0xff]
    %v91 = vld [vmem:[#allocation5 + $0x158] sm:$0xff]
    %v92 = vld [vmem:[#allocation5 + $0x160] sm:$0xff]
    %v93 = vld [vmem:[#allocation5 + $0x168] sm:$0xff]
    %v94 = vld [vmem:[#allocation5 + $0x170] sm:$0xff]
    %v95 = vld [vmem:[#allocation5 + $0x178] sm:$0xff]
    %v96 = vld [vmem:[#allocation5 + $0x180] sm:$0xff]
    %v97 = vld [vmem:[#allocation5 + $0x188] sm:$0xff]
    %v98 = vld [vmem:[#allocation5 + $0x190] sm:$0xff]
    %v99 = vld [vmem:[#allocation5 + $0x198] sm:$0xff]
    %v100 = vld [vmem:[#allocation5 + $0x1a0] sm:$0xff]
    %v101 = vld [vmem:[#allocation5 + $0x1a8] sm:$0xff]
    %v102 = vld [vmem:[#allocation5 + $0x1b0] sm:$0xff]
    %v103 = vld [vmem:[#allocation5 + $0x1b8] sm:$0xff]
    %v104 = vld [vmem:[#allocation5 + $0x1c0] sm:$0xff]
    %v105 = vld [vmem:[#allocation5 + $0x1c8] sm:$0xff]
    %v106 = vld [vmem:[#allocation5 + $0x1d0] sm:$0xff]
    %v107 = vld [vmem:[#allocation5 + $0x1d8] sm:$0xff]
    %v108 = vld [vmem:[#allocation5 + $0x1e0] sm:$0xff]
    %v109 = vld [vmem:[#allocation5 + $0x1e8] sm:$0xff]
    %v110 = vld [vmem:[#allocation5 + $0x1f0] sm:$0xff]
    %v111 = vld [vmem:[#allocation5 + $0x1f8] sm:$0xff]
    %v112 = vld [vmem:[#allocation5 + $0x200] sm:$0xff]
    %v113 = vld [vmem:[#allocation5 + $0x208] sm:$0xff]
    %v114 = vld [vmem:[#allocation5 + $0x210] sm:$0xff]
    %v115 = vld [vmem:[#allocation5 + $0x218] sm:$0xff]
    %v116 = vld [vmem:[#allocation5 + $0x220] sm:$0xff]
    %v117 = vld [vmem:[#allocation5 + $0x228] sm:$0xff]
    %v118 = vld [vmem:[#allocation5 + $0x230] sm:$0xff]
    %v119 = vld [vmem:[#allocation5 + $0x238] sm:$0xff]
    %v120 = vld [vmem:[#allocation5 + $0x240] sm:$0xff]
    %v121 = vld [vmem:[#allocation5 + $0x248] sm:$0xff]
    %v122 = vld [vmem:[#allocation5 + $0x250] sm:$0xff]
    %v123 = vld [vmem:[#allocation5 + $0x258] sm:$0xff]
    %v124 = vld [vmem:[#allocation5 + $0x260] sm:$0xff]
    %v125 = vld [vmem:[#allocation5 + $0x268] sm:$0xff]
    %v126 = vld [vmem:[#allocation5 + $0x270] sm:$0xff]
    %v127 = vld [vmem:[#allocation5 + $0x278] sm:$0xff]
    %v128 = vld [vmem:[#allocation5 + $0x280] sm:$0xff]
    %v129 = vld [vmem:[#allocation5 + $0x288] sm:$0xff]
    %v130 = vld [vmem:[#allocation5 + $0x290] sm:$0xff]
    %v131 = vld [vmem:[#allocation5 + $0x298] sm:$0xff]
    %v132 = vld [vmem:[#allocation5 + $0x2a0] sm:$0xff]
    %v133 = vld [vmem:[#allocation5 + $0x2a8] sm:$0xff]
    %v134 = vld [vmem:[#allocation5 + $0x2b0] sm:$0xff]
    %v135 = vld [vmem:[#allocation5 + $0x2b8] sm:$0xff]
    %v136 = vld [vmem:[#allocation5 + $0x2c0] sm:$0xff]
    %v137 = vld [vmem:[#allocation5 + $0x2c8] sm:$0xff]
    %v138 = vld [vmem:[#allocation5 + $0x2d0] sm:$0xff]
    %v139 = vld [vmem:[#allocation5 + $0x2d8] sm:$0xff]
    %v140 = vld [vmem:[#allocation5 + $0x2e0] sm:$0xff]
    %v141 = vld [vmem:[#allocation5 + $0x2e8] sm:$0xff]
    %v142 = vld [vmem:[#allocation5 + $0x2f0] sm:$0xff]
    %v143 = vld [vmem:[#allocation5 + $0x2f8] sm:$0xff]
    %v144 = vld [vmem:[#allocation5 + $0x300] sm:$0xff]
    %v145 = vld [vmem:[#allocation5 + $0x308] sm:$0xff]
    %v146 = vld [vmem:[#allocation5 + $0x310] sm:$0xff]
    %v147 = vld [vmem:[#allocation5 + $0x318] sm:$0xff]
    %v148 = vld [vmem:[#allocation5 + $0x320] sm:$0xff]
    %v149 = vld [vmem:[#allocation5 + $0x328] sm:$0xff]
    %v150 = vld [vmem:[#allocation5 + $0x330] sm:$0xff]
    %v151 = vld [vmem:[#allocation5 + $0x338] sm:$0xff]
    %v152 = vld [vmem:[#allocation5 + $0x340] sm:$0xff]
    %v153 = vld [vmem:[#allocation5 + $0x348] sm:$0xff]
    %v154 = vld [vmem:[#allocation5 + $0x350] sm:$0xff]
    %v155 = vld [vmem:[#allocation5 + $0x358] sm:$0xff]
    %v156 = vld [vmem:[#allocation5 + $0x360] sm:$0xff]
    %v157 = vld [vmem:[#allocation5 + $0x368] sm:$0xff]
    %v158 = vld [vmem:[#allocation5 + $0x370] sm:$0xff]
    %v159 = vld [vmem:[#allocation5 + $0x378] sm:$0xff]
    %v160 = vld [vmem:[#allocation5 + $0x380] sm:$0xff]
    %v161 = vld [vmem:[#allocation5 + $0x388] sm:$0xff]
    %v162 = vld [vmem:[#allocation5 + $0x390] sm:$0xff]
    %v163 = vld [vmem:[#allocation5 + $0x398] sm:$0xff]
    %v164 = vld [vmem:[#allocation5 + $0x3a0] sm:$0xff]
    %v165 = vld [vmem:[#allocation5 + $0x3a8] sm:$0xff]
    %v166 = vld [vmem:[#allocation5 + $0x3b0] sm:$0xff]
    %v167 = vld [vmem:[#allocation5 + $0x3b8] sm:$0xff]
    %v168 = vld [vmem:[#allocation5 + $0x3c0] sm:$0xff]
    %v169 = vld [vmem:[#allocation5 + $0x3c8] sm:$0xff]
    %v170 = vld [vmem:[#allocation5 + $0x3d0] sm:$0xff]
    %v171 = vld [vmem:[#allocation5 + $0x3d8] sm:$0xff]
    %v172 = vld [vmem:[#allocation5 + $0x3e0] sm:$0xff]
    %v173 = vld [vmem:[#allocation5 + $0x3e8] sm:$0xff]
    %v174 = vld [vmem:[#allocation5 + $0x3f0] sm:$0xff]
    %v175 = vld [vmem:[#allocation5 + $0x3f8] sm:$0xff]
    %v176 = vld [vmem:[#allocation5 + $0x400] sm:$0xff]
    %v177 = vld [vmem:[#allocation5 + $0x408] sm:$0xff]
    %v178 = vld [vmem:[#allocation5 + $0x410] sm:$0xff]
    %v179 = vld [vmem:[#allocation5 + $0x418] sm:$0xff]
    %v180 = vld [vmem:[#allocation5 + $0x420] sm:$0xff]
    %v181 = vld [vmem:[#allocation5 + $0x428] sm:$0xff]
    %v182 = vld [vmem:[#allocation5 + $0x430] sm:$0xff]
    %v183 = vld [vmem:[#allocation5 + $0x438] sm:$0xff]
    %v184 = vld [vmem:[#allocation5 + $0x440] sm:$0xff]
    %v185 = vld [vmem:[#allocation5 + $0x448] sm:$0xff]
    %v186 = vld [vmem:[#allocation5 + $0x450] sm:$0xff]
    %v187 = vld [vmem:[#allocation5 + $0x458] sm:$0xff]
    %v188 = vld [vmem:[#allocation5 + $0x460] sm:$0xff]
    %v189 = vld [vmem:[#allocation5 + $0x468] sm:$0xff]
    %v190 = vld [vmem:[#allocation5 + $0x470] sm:$0xff]
    %v191 = vld [vmem:[#allocation5 + $0x478] sm:$0xff]
    %v192 = vld [vmem:[#allocation5 + $0x480] sm:$0xff]
    %v193 = vld [vmem:[#allocation5 + $0x488] sm:$0xff]
    %v194 = vld [vmem:[#allocation5 + $0x490] sm:$0xff]
    %v195 = vld [vmem:[#allocation5 + $0x498] sm:$0xff]
    %v196 = vld [vmem:[#allocation5 + $0x4a0] sm:$0xff]
    %v197 = vld [vmem:[#allocation5 + $0x4a8] sm:$0xff]
    %v198 = vld [vmem:[#allocation5 + $0x4b0] sm:$0xff]
    %v199 = vld [vmem:[#allocation5 + $0x4b8] sm:$0xff]
    %v200 = vld [vmem:[#allocation5 + $0x4c0] sm:$0xff]
    %v201 = vld [vmem:[#allocation5 + $0x4c8] sm:$0xff]
    %v202 = vld [vmem:[#allocation5 + $0x4d0] sm:$0xff]
    %v203 = vld [vmem:[#allocation5 + $0x4d8] sm:$0xff]
    %v204 = vld [vmem:[#allocation5 + $0x4e0] sm:$0xff]
    %v205 = vld [vmem:[#allocation5 + $0x4e8] sm:$0xff]
    %v206 = vld [vmem:[#allocation5 + $0x4f0] sm:$0xff]
    %v207 = vld [vmem:[#allocation5 + $0x4f8] sm:$0xff]
    %v208 = vld [vmem:[#allocation5 + $0x500] sm:$0xff]
    %v209 = vld [vmem:[#allocation5 + $0x508] sm:$0xff]
    %v210 = vld [vmem:[#allocation5 + $0x510] sm:$0xff]
    %v211 = vld [vmem:[#allocation5 + $0x518] sm:$0xff]
    %v212 = vld [vmem:[#allocation5 + $0x520] sm:$0xff]
    %v213 = vld [vmem:[#allocation5 + $0x528] sm:$0xff]
    %v214 = vld [vmem:[#allocation5 + $0x530] sm:$0xff]
    %v215 = vld [vmem:[#allocation5 + $0x538] sm:$0xff]
    %v216 = vld [vmem:[#allocation5 + $0x540] sm:$0xff]
    %v217 = vld [vmem:[#allocation5 + $0x548] sm:$0xff]
    %v218 = vld [vmem:[#allocation5 + $0x550] sm:$0xff]
    %v219 = vld [vmem:[#allocation5 + $0x558] sm:$0xff]
    %v220 = vld [vmem:[#allocation5 + $0x560] sm:$0xff]
    %v221 = vld [vmem:[#allocation5 + $0x568] sm:$0xff]
    %v222 = vld [vmem:[#allocation5 + $0x570] sm:$0xff]
    %v223 = vld [vmem:[#allocation5 + $0x578] sm:$0xff]
    %v224 = vld [vmem:[#allocation5 + $0x580] sm:$0xff]
    %v225 = vld [vmem:[#allocation5 + $0x588] sm:$0xff]
    %v226 = vld [vmem:[#allocation5 + $0x590] sm:$0xff]
    %v227 = vld [vmem:[#allocation5 + $0x598] sm:$0xff]
    %v228 = vld [vmem:[#allocation5 + $0x5a0] sm:$0xff]
    %v229 = vld [vmem:[#allocation5 + $0x5a8] sm:$0xff]
    %v230 = vld [vmem:[#allocation5 + $0x5b0] sm:$0xff]
    %v231 = vld [vmem:[#allocation5 + $0x5b8] sm:$0xff]
    %v232 = vld [vmem:[#allocation5 + $0x5c0] sm:$0xff]
    %v233 = vld [vmem:[#allocation5 + $0x5c8] sm:$0xff]
    %v234 = vld [vmem:[#allocation5 + $0x5d0] sm:$0xff]
    %v235 = vld [vmem:[#allocation5 + $0x5d8] sm:$0xff]
    %v236 = vld [vmem:[#allocation5 + $0x5e0] sm:$0xff]
    %v237 = vld [vmem:[#allocation5 + $0x5e8] sm:$0xff]
    %v238 = vld [vmem:[#allocation5 + $0x5f0] sm:$0xff]
    %v239 = vld [vmem:[#allocation5 + $0x5f8] sm:$0xff]
    %v240 = vld [vmem:[#allocation5 + $0x600] sm:$0xff]
    %v241 = vld [vmem:[#allocation5 + $0x608] sm:$0xff]
    %v242 = vld [vmem:[#allocation5 + $0x610] sm:$0xff]
    %v243 = vld [vmem:[#allocation5 + $0x618] sm:$0xff]
    %v244 = vld [vmem:[#allocation5 + $0x620] sm:$0xff]
    %v245 = vld [vmem:[#allocation5 + $0x628] sm:$0xff]
    %v246 = vld [vmem:[#allocation5 + $0x630] sm:$0xff]
    %v247 = vld [vmem:[#allocation5 + $0x638] sm:$0xff]
    %v248 = vld [vmem:[#allocation5 + $0x640] sm:$0xff]
    %v249 = vld [vmem:[#allocation5 + $0x648] sm:$0xff]
    %v250 = vld [vmem:[#allocation5 + $0x650] sm:$0xff]
    %v251 = vld [vmem:[#allocation5 + $0x658] sm:$0xff]
    %v252 = vld [vmem:[#allocation5 + $0x660] sm:$0xff]
    %v253 = vld [vmem:[#allocation5 + $0x668] sm:$0xff]
    %v254 = vld [vmem:[#allocation5 + $0x670] sm:$0xff]
    %v255 = vld [vmem:[#allocation5 + $0x678] sm:$0xff]
    %v256 = vld [vmem:[#allocation5 + $0x680] sm:$0xff]
    %v257 = vld [vmem:[#allocation5 + $0x688] sm:$0xff]
    %v258 = vld [vmem:[#allocation5 + $0x690] sm:$0xff]
    %v259 = vld [vmem:[#allocation5 + $0x698] sm:$0xff]
    %v260 = vld [vmem:[#allocation5 + $0x6a0] sm:$0xff]
    %v261 = vld [vmem:[#allocation5 + $0x6a8] sm:$0xff]
    %v262 = vld [vmem:[#allocation5 + $0x6b0] sm:$0xff]
    %v263 = vld [vmem:[#allocation5 + $0x6b8] sm:$0xff]
    %v264 = vld [vmem:[#allocation5 + $0x6c0] sm:$0xff]
    %v265 = vld [vmem:[#allocation5 + $0x6c8] sm:$0xff]
    %v266 = vld [vmem:[#allocation5 + $0x6d0] sm:$0xff]
    %v267 = vld [vmem:[#allocation5 + $0x6d8] sm:$0xff]
    %v268 = vld [vmem:[#allocation5 + $0x6e0] sm:$0xff]
    %v269 = vld [vmem:[#allocation5 + $0x6e8] sm:$0xff]
    %v270 = vld [vmem:[#allocation5 + $0x6f0] sm:$0xff]
    %v271 = vld [vmem:[#allocation5 + $0x6f8] sm:$0xff]
    %v272 = vld [vmem:[#allocation5 + $0x700] sm:$0xff]
    %v273 = vld [vmem:[#allocation5 + $0x708] sm:$0xff]
    %v274 = vld [vmem:[#allocation5 + $0x710] sm:$0xff]
    %v275 = vld [vmem:[#allocation5 + $0x718] sm:$0xff]
    %v276 = vld [vmem:[#allocation5 + $0x720] sm:$0xff]
    %v277 = vld [vmem:[#allocation5 + $0x728] sm:$0xff]
    %v278 = vld [vmem:[#allocation5 + $0x730] sm:$0xff]
    %v279 = vld [vmem:[#allocation5 + $0x738] sm:$0xff]
    %v280 = vld [vmem:[#allocation5 + $0x740] sm:$0xff]
    %v281 = vld [vmem:[#allocation5 + $0x748] sm:$0xff]
    %v282 = vld [vmem:[#allocation5 + $0x750] sm:$0xff]
    %v283 = vld [vmem:[#allocation5 + $0x758] sm:$0xff]
    %v284 = vld [vmem:[#allocation5 + $0x760] sm:$0xff]
    %v285 = vld [vmem:[#allocation5 + $0x768] sm:$0xff]
    %v286 = vld [vmem:[#allocation5 + $0x770] sm:$0xff]
    %v287 = vld [vmem:[#allocation5 + $0x778] sm:$0xff]
    %v288 = vld [vmem:[#allocation5 + $0x780] sm:$0xff]
    %v289 = vld [vmem:[#allocation5 + $0x788] sm:$0xff]
    %v290 = vld [vmem:[#allocation5 + $0x790] sm:$0xff]
    %v291 = vld [vmem:[#allocation5 + $0x798] sm:$0xff]
    %v292 = vld [vmem:[#allocation5 + $0x7a0] sm:$0xff]
    %v293 = vld [vmem:[#allocation5 + $0x7a8] sm:$0xff]
    %v294 = vld [vmem:[#allocation5 + $0x7b0] sm:$0xff]
    %v295 = vld [vmem:[#allocation5 + $0x7b8] sm:$0xff]
    %v296 = vld [vmem:[#allocation5 + $0x7c0] sm:$0xff]
    %v297 = vld [vmem:[#allocation5 + $0x7c8] sm:$0xff]
    %v298 = vld [vmem:[#allocation5 + $0x7d0] sm:$0xff]
    %v299 = vld [vmem:[#allocation5 + $0x7d8] sm:$0xff]
    %v300 = vld [vmem:[#allocation5 + $0x7e0] sm:$0xff]
    %v301 = vld [vmem:[#allocation5 + $0x7e8] sm:$0xff]
    %v302 = vld [vmem:[#allocation5 + $0x7f0] sm:$0xff]
    %v303 = vld [vmem:[#allocation5 + $0x7f8] sm:$0xff]
    %304 = vmatprep.subr.mxu0 %v49
    %305 = vmatpush1.msra.mxu0 %v48
    %306 = vmatprep.subr.mxu0 %v53
    %307 = vmatpush1.msra.mxu0 %v52
    %308 = vmatprep.subr.mxu0 %v57
    %309 = vmatpush1.msra.mxu0 %v56
    %310 = vmatprep.subr.mxu0 %v61
    %311 = vmatpush1.msra.mxu0 %v60
    %312 = vmatprep.subr.mxu0 %v65
    %313 = vmatpush1.msra.mxu0 %v64
    %314 = vmatprep.subr.mxu0 %v69
    %315 = vmatpush1.msra.mxu0 %v68
    %316 = vmatprep.subr.mxu0 %v73
    %317 = vmatpush1.msra.mxu0 %v72
    %318 = vmatprep.subr.mxu0 %v77
    %319 = vmatpush1.msra.mxu0 %v76
    %320 = vmatprep.subr.mxu0 %v81
    %321 = vmatpush1.msra.mxu0 %v80
    %322 = vmatprep.subr.mxu0 %v85
    %323 = vmatpush1.msra.mxu0 %v84
    %324 = vmatprep.subr.mxu0 %v89
    %325 = vmatpush1.msra.mxu0 %v88
    %326 = vmatprep.subr.mxu0 %v93
    %327 = vmatpush1.msra.mxu0 %v92
    %328 = vmatprep.subr.mxu0 %v97
    %329 = vmatpush1.msra.mxu0 %v96
    %330 = vmatprep.subr.mxu0 %v101
    %331 = vmatpush1.msra.mxu0 %v100
    %332 = vmatprep.subr.mxu0 %v105
    %333 = vmatpush1.msra.mxu0 %v104
    %334 = vmatprep.subr.mxu0 %v109
    %335 = vmatpush1.msra.mxu0 %v108
    %336 = vmatprep.subr.mxu0 %v113
    %337 = vmatpush1.msra.mxu0 %v112
    %338 = vmatprep.subr.mxu0 %v117
    %339 = vmatpush1.msra.mxu0 %v116
    %340 = vmatprep.subr.mxu0 %v121
    %341 = vmatpush1.msra.mxu0 %v120
    %342 = vmatprep.subr.mxu0 %v125
    %343 = vmatpush1.msra.mxu0 %v124
    %344 = vmatprep.subr.mxu0 %v129
    %345 = vmatpush1.msra.mxu0 %v128
    %346 = vmatprep.subr.mxu0 %v133
    %347 = vmatpush1.msra.mxu0 %v132
    %348 = vmatprep.subr.mxu0 %v137
    %349 = vmatpush1.msra.mxu0 %v136
    %350 = vmatprep.subr.mxu0 %v141
    %351 = vmatpush1.msra.mxu0 %v140
    %352 = vmatprep.subr.mxu0 %v145
    %353 = vmatpush1.msra.mxu0 %v144
    %354 = vmatprep.subr.mxu0 %v149
    %355 = vmatpush1.msra.mxu0 %v148
    %356 = vmatprep.subr.mxu0 %v153
    %357 = vmatpush1.msra.mxu0 %v152
    %358 = vmatprep.subr.mxu0 %v157
    %359 = vmatpush1.msra.mxu0 %v156
    %360 = vmatprep.subr.mxu0 %v161
    %361 = vmatpush1.msra.mxu0 %v160
    %362 = vmatprep.subr.mxu0 %v165
    %363 = vmatpush1.msra.mxu0 %v164
    %364 = vmatprep.subr.mxu0 %v169
    %365 = vmatpush1.msra.mxu0 %v168
    %366 = vmatprep.subr.mxu0 %v173
    %367 = vmatpush1.msra.mxu0 %v172
    %368 = vmatprep.mubr.f32.mxu0 %v41
    %369 = vmatmul.mubr.f32.gmra.mrb[0].mxu0 %v40
    %v370 = vpop.f32.mrb[0].mxu0
    %v371 = vadd.f32 0.0, %v370
    %v372 = vpop.f32.mrb[0].mxu0
    %v373 = vadd.f32 0.0, %v372
    %374 = vmatprep.mubr.f32.mxu0 %v45
    %375 = vmatmul.mubr.f32.gmra.mrb[0].mxu0 %v44
    %v376 = vpop.f32.mrb[0].mxu0
    %v377 = vadd.f32 0.0, %v376
    %v378 = vpop.f32.mrb[0].mxu0
    %v379 = vadd.f32 0.0, %v378
    %380 = vdwg.mxu0
    %381 = vmatprep.subr.mxu0 %v177
    %382 = vmatpush1.msra.mxu0 %v176
    %383 = vmatprep.subr.mxu0 %v181
    %384 = vmatpush1.msra.mxu0 %v180
    %385 = vmatprep.subr.mxu0 %v185
    %386 = vmatpush1.msra.mxu0 %v184
    %387 = vmatprep.subr.mxu0 %v189
    %388 = vmatpush1.msra.mxu0 %v188
    %389 = vmatprep.subr.mxu0 %v193
    %390 = vmatpush1.msra.mxu0 %v192
    %391 = vmatprep.subr.mxu0 %v197
    %392 = vmatpush1.msra.mxu0 %v196
    %393 = vmatprep.subr.mxu0 %v201
    %394 = vmatpush1.msra.mxu0 %v200
    %395 = vmatprep.subr.mxu0 %v205
    %396 = vmatpush1.msra.mxu0 %v204
    %397 = vmatprep.subr.mxu0 %v209
    %398 = vmatpush1.msra.mxu0 %v208
    %399 = vmatprep.subr.mxu0 %v213
    %400 = vmatpush1.msra.mxu0 %v212
    %401 = vmatprep.subr.mxu0 %v217
    %402 = vmatpush1.msra.mxu0 %v216
    %403 = vmatprep.subr.mxu0 %v221
    %404 = vmatpush1.msra.mxu0 %v220
    %405 = vmatprep.subr.mxu0 %v225
    %406 = vmatpush1.msra.mxu0 %v224
    %407 = vmatprep.subr.mxu0 %v229
    %408 = vmatpush1.msra.mxu0 %v228
    %409 = vmatprep.subr.mxu0 %v233
    %410 = vmatpush1.msra.mxu0 %v232
    %411 = vmatprep.subr.mxu0 %v237
    %412 = vmatpush1.msra.mxu0 %v236
    %413 = vmatprep.subr.mxu0 %v241
    %414 = vmatpush1.msra.mxu0 %v240
    %415 = vmatprep.subr.mxu0 %v245
    %416 = vmatpush1.msra.mxu0 %v244
    %417 = vmatprep.subr.mxu0 %v249
    %418 = vmatpush1.msra.mxu0 %v248
    %419 = vmatprep.subr.mxu0 %v253
    %420 = vmatpush1.msra.mxu0 %v252
    %421 = vmatprep.subr.mxu0 %v257
    %422 = vmatpush1.msra.mxu0 %v256
    %423 = vmatprep.subr.mxu0 %v261
    %424 = vmatpush1.msra.mxu0 %v260
    %425 = vmatprep.subr.mxu0 %v265
    %426 = vmatpush1.msra.mxu0 %v264
    %427 = vmatprep.subr.mxu0 %v269
    %428 = vmatpush1.msra.mxu0 %v268
    %429 = vmatprep.subr.mxu0 %v273
    %430 = vmatpush1.msra.mxu0 %v272
    %431 = vmatprep.subr.mxu0 %v277
    %432 = vmatpush1.msra.mxu0 %v276
    %433 = vmatprep.subr.mxu0 %v281
    %434 = vmatpush1.msra.mxu0 %v280
    %435 = vmatprep.subr.mxu0 %v285
    %436 = vmatpush1.msra.mxu0 %v284
    %437 = vmatprep.subr.mxu0 %v289
    %438 = vmatpush1.msra.mxu0 %v288
    %439 = vmatprep.subr.mxu0 %v293
    %440 = vmatpush1.msra.mxu0 %v292
    %441 = vmatprep.subr.mxu0 %v297
    %442 = vmatpush1.msra.mxu0 %v296
    %443 = vmatprep.subr.mxu0 %v301
    %444 = vmatpush1.msra.mxu0 %v300
    %445 = vmatprep.mubr.f32.mxu0 %v43
    %446 = vmatmul.mubr.f32.gmra.mrb[0].mxu0 %v42
    %v447 = vpop.f32.mrb[0].mxu0
    %v448 = vadd.f32 %v371, %v447
    %v449 = vpop.f32.mrb[0].mxu0
    %v450 = vadd.f32 %v373, %v449
    %451 = vmatprep.mubr.f32.mxu0 %v47
    %452 = vmatmul.mubr.f32.gmra.mrb[0].mxu0 %v46
    %v453 = vpop.f32.mrb[0].mxu0
    %v454 = vadd.f32 %v377, %v453
    %v455 = vpop.f32.mrb[0].mxu0
    %v456 = vadd.f32 %v379, %v455
    %457 = vdwg.mxu0
    %458 = vmatprep.subr.mxu0 %v51
    %459 = vmatpush1.msra.mxu0 %v50
    %460 = vmatprep.subr.mxu0 %v55
    %461 = vmatpush1.msra.mxu0 %v54
    %462 = vmatprep.subr.mxu0 %v59
    %463 = vmatpush1.msra.mxu0 %v58
    %464 = vmatprep.subr.mxu0 %v63
    %465 = vmatpush1.msra.mxu0 %v62
    %466 = vmatprep.subr.mxu0 %v67
    %467 = vmatpush1.msra.mxu0 %v66
    %468 = vmatprep.subr.mxu0 %v71
    %469 = vmatpush1.msra.mxu0 %v70
    %470 = vmatprep.subr.mxu0 %v75
    %471 = vmatpush1.msra.mxu0 %v74
    %472 = vmatprep.subr.mxu0 %v79
    %473 = vmatpush1.msra.mxu0 %v78
    %474 = vmatprep.subr.mxu0 %v83
    %475 = vmatpush1.msra.mxu0 %v82
    %476 = vmatprep.subr.mxu0 %v87
    %477 = vmatpush1.msra.mxu0 %v86
    %478 = vmatprep.subr.mxu0 %v91
    %479 = vmatpush1.msra.mxu0 %v90
    %480 = vmatprep.subr.mxu0 %v95
    %481 = vmatpush1.msra.mxu0 %v94
    %482 = vmatprep.subr.mxu0 %v99
    %483 = vmatpush1.msra.mxu0 %v98
    %484 = vmatprep.subr.mxu0 %v103
    %485 = vmatpush1.msra.mxu0 %v102
    %486 = vmatprep.subr.mxu0 %v107
    %487 = vmatpush1.msra.mxu0 %v106
    %488 = vmatprep.subr.mxu0 %v111
    %489 = vmatpush1.msra.mxu0 %v110
    %490 = vmatprep.subr.mxu0 %v115
    %491 = vmatpush1.msra.mxu0 %v114
    %492 = vmatprep.subr.mxu0 %v119
    %493 = vmatpush1.msra.mxu0 %v118
    %494 = vmatprep.subr.mxu0 %v123
    %495 = vmatpush1.msra.mxu0 %v122
    %496 = vmatprep.subr.mxu0 %v127
    %497 = vmatpush1.msra.mxu0 %v126
    %498 = vmatprep.subr.mxu0 %v131
    %499 = vmatpush1.msra.mxu0 %v130
    %500 = vmatprep.subr.mxu0 %v135
    %501 = vmatpush1.msra.mxu0 %v134
    %502 = vmatprep.subr.mxu0 %v139
    %503 = vmatpush1.msra.mxu0 %v138
    %504 = vmatprep.subr.mxu0 %v143
    %505 = vmatpush1.msra.mxu0 %v142
    %506 = vmatprep.subr.mxu0 %v147
    %507 = vmatpush1.msra.mxu0 %v146
    %508 = vmatprep.subr.mxu0 %v151
    %509 = vmatpush1.msra.mxu0 %v150
    %510 = vmatprep.subr.mxu0 %v155
    %511 = vmatpush1.msra.mxu0 %v154
    %512 = vmatprep.subr.mxu0 %v159
    %513 = vmatpush1.msra.mxu0 %v158
    %514 = vmatprep.subr.mxu0 %v163
    %515 = vmatpush1.msra.mxu0 %v162
    %516 = vmatprep.subr.mxu0 %v167
    %517 = vmatpush1.msra.mxu0 %v166
    %518 = vmatprep.subr.mxu0 %v171
    %519 = vmatpush1.msra.mxu0 %v170
    %520 = vmatprep.subr.mxu0 %v175
    %521 = vmatpush1.msra.mxu0 %v174
    %522 = vmatprep.mubr.f32.mxu0 %v41
    %523 = vmatmul.mubr.f32.gmra.mrb[0].mxu0 %v40
    %v524 = vpop.f32.mrb[0].mxu0
    %v525 = vadd.f32 0.0, %v524
    %v526 = vpop.f32.mrb[0].mxu0
    %v527 = vadd.f32 0.0, %v526
    %528 = vmatprep.mubr.f32.mxu0 %v45
    %529 = vmatmul.mubr.f32.gmra.mrb[0].mxu0 %v44
    %v530 = vpop.f32.mrb[0].mxu0
    %v531 = vadd.f32 0.0, %v530
    %v532 = vpop.f32.mrb[0].mxu0
    %v533 = vadd.f32 0.0, %v532
    %534 = vdwg.mxu0
    %535 = vmatprep.subr.mxu0 %v179
    %536 = vmatpush1.msra.mxu0 %v178
    %537 = vmatprep.subr.mxu0 %v183
    %538 = vmatpush1.msra.mxu0 %v182
    %539 = vmatprep.subr.mxu0 %v187
    %540 = vmatpush1.msra.mxu0 %v186
    %541 = vmatprep.subr.mxu0 %v191
    %542 = vmatpush1.msra.mxu0 %v190
    %543 = vmatprep.subr.mxu0 %v195
    %544 = vmatpush1.msra.mxu0 %v194
    %545 = vmatprep.subr.mxu0 %v199
    %546 = vmatpush1.msra.mxu0 %v198
    %547 = vmatprep.subr.mxu0 %v203
    %548 = vmatpush1.msra.mxu0 %v202
    %549 = vmatprep.subr.mxu0 %v207
    %550 = vmatpush1.msra.mxu0 %v206
    %551 = vmatprep.subr.mxu0 %v211
    %552 = vmatpush1.msra.mxu0 %v210
    %553 = vmatprep.subr.mxu0 %v215
    %554 = vmatpush1.msra.mxu0 %v214
    %555 = vmatprep.subr.mxu0 %v219
    %556 = vmatpush1.msra.mxu0 %v218
    %557 = vmatprep.subr.mxu0 %v223
    %558 = vmatpush1.msra.mxu0 %v222
    %559 = vmatprep.subr.mxu0 %v227
    %560 = vmatpush1.msra.mxu0 %v226
    %561 = vmatprep.subr.mxu0 %v231
    %562 = vmatpush1.msra.mxu0 %v230
    %563 = vmatprep.subr.mxu0 %v235
    %564 = vmatpush1.msra.mxu0 %v234
    %565 = vmatprep.subr.mxu0 %v239
    %566 = vmatpush1.msra.mxu0 %v238
    %567 = vmatprep.subr.mxu0 %v243
    %568 = vmatpush1.msra.mxu0 %v242
    %569 = vmatprep.subr.mxu0 %v247
    %570 = vmatpush1.msra.mxu0 %v246
    %571 = vmatprep.subr.mxu0 %v251
    %572 = vmatpush1.msra.mxu0 %v250
    %573 = vmatprep.subr.mxu0 %v255
    %574 = vmatpush1.msra.mxu0 %v254
    %575 = vmatprep.subr.mxu0 %v259
    %576 = vmatpush1.msra.mxu0 %v258
    %577 = vmatprep.subr.mxu0 %v263
    %578 = vmatpush1.msra.mxu0 %v262
    %579 = vmatprep.subr.mxu0 %v267
    %580 = vmatpush1.msra.mxu0 %v266
    %581 = vmatprep.subr.mxu0 %v271
    %582 = vmatpush1.msra.mxu0 %v270
    %583 = vmatprep.subr.mxu0 %v275
    %584 = vmatpush1.msra.mxu0 %v274
    %585 = vmatprep.subr.mxu0 %v279
    %586 = vmatpush1.msra.mxu0 %v278
    %587 = vmatprep.subr.mxu0 %v283
    %588 = vmatpush1.msra.mxu0 %v282
    %589 = vmatprep.subr.mxu0 %v287
    %590 = vmatpush1.msra.mxu0 %v286
    %591 = vmatprep.subr.mxu0 %v291
    %592 = vmatpush1.msra.mxu0 %v290
    %593 = vmatprep.subr.mxu0 %v295
    %594 = vmatpush1.msra.mxu0 %v294
    %595 = vmatprep.subr.mxu0 %v299
    %596 = vmatpush1.msra.mxu0 %v298
    %597 = vmatprep.subr.mxu0 %v303
    %598 = vmatpush1.msra.mxu0 %v302
    %599 = vmatprep.mubr.f32.mxu0 %v43
    %600 = vmatmul.mubr.f32.gmra.mrb[0].mxu0 %v42
    %v601 = vpop.f32.mrb[0].mxu0
    %v602 = vadd.f32 %v525, %v601
    %v603 = vpop.f32.mrb[0].mxu0
    %v604 = vadd.f32 %v527, %v603
    %605 = vmatprep.mubr.f32.mxu0 %v47
    %606 = vmatmul.mubr.f32.gmra.mrb[0].mxu0 %v46
    %v607 = vpop.f32.mrb[0].mxu0
    %v608 = vadd.f32 %v531, %v607
    %v609 = vpop.f32.mrb[0].mxu0
    %v610 = vadd.f32 %v533, %v609
    %611 = vdwg.mxu0
    %612 = vst [vmem:[#allocation7] sm:$0xff] %v448
    %613 = vst [vmem:[#allocation7 + $0x8] sm:$0xff] %v450
    %614 = vst [vmem:[#allocation7 + $0x10] sm:$0xff] %v602
    %615 = vst [vmem:[#allocation7 + $0x18] sm:$0xff] %v604
    %616 = vst [vmem:[#allocation7 + $0x20] sm:$0xff] %v454
    %617 = vst [vmem:[#allocation7 + $0x28] sm:$0xff] %v456
    %618 = vst [vmem:[#allocation7 + $0x30] sm:$0xff] %v608
    %619 = vst [vmem:[#allocation7 + $0x38] sm:$0xff] %v610
    // Predicated region
    $region18: #{tpu_custom_call.1} parent=1 // pred_check
      _
    $region19: #{tpu_custom_call.1} parent=1 // pred_check_branch
      %621 = sbr.rel (0) target = $region21
    $region20: #{tpu_custom_call.1} parent=1 // pred_region
      %s623 = ssub.s32 1024, 1024
      %624 = vsyncadd [#allocation4], %s623
      %s625 = sshll.u32 [#allocation7], 4
      %s626 = int_to_ptr.vmem [resolvable:$true] %s625
      %631 = dma.vmem_to_hbm [thread:$0]  %s626, 1024, %s2, [#allocation4], 512, 512, 32
    $region21: #{tpu_custom_call.1} parent=1 // pred_fallthru
      _
    // Predicated region
    $region22: #{tpu_custom_call.1} parent=1 // pred_check
      _
    $region23: #{tpu_custom_call.1} parent=1 // pred_check_branch
      %633 = sbr.rel (0) target = $region25
    $region24: #{tpu_custom_call.1} parent=1 // pred_region
      %634 = dma.done [#allocation4], 1024
    $region25: #{tpu_custom_call.1} parent=1 // pred_fallthru
      _
    %635 = vsyncpa [#allocation3], 1
    %636 = vsyncpa [#allocation6], 1
    %637 = vsyncpa [#allocation4], 1

</llo_original>
